<compile_context>
chip_gen: v7x
topology: tpu7x:2x2x1
jax: 0.10.0
libtpu: 0.0.40
codegen_flags: <defaults>
</compile_context>

<pallas_src>
import math

import jax
import jax.numpy as jnp
from jax.experimental import pallas as pl
from jax.experimental.pallas import tpu as pltpu


def data_embedding_kernel(xc_ref, w_ref, pos_ref, o_ref):
    # xc_ref:  (TB, TL, 3C)  circular shifts concatenated on channels:
    #                        [x[t-1], x[t], x[t+1]] for a (batch, L) tile.
    # w_ref:   (3C, Dp)      conv taps flattened tap-major (matches xc order).
    # pos_ref: (TL, Dp)      positional embedding with conv bias folded (f32);
    #                        reused across batch steps (index depends on L only).
    # o_ref:   (TB, TL, Dp)
    tb, tl, c3 = xc_ref.shape
    x2d = xc_ref[...].reshape(tb * tl, c3)          # merge leading dims (free)
    acc = jnp.dot(x2d, w_ref[...], preferred_element_type=jnp.float32)
    acc = acc.reshape(tb, tl, acc.shape[-1]) + pos_ref[...][None]
    # TODO(synk): training-mode dropout not implemented (eval-mode identity);
    # would need pltpu.prng_seed / pltpu.prng_random_bits in-kernel.
    o_ref[...] = acc.astype(o_ref.dtype)


def positional_embedding(seq_len, d_model):
    position = jnp.arange(seq_len, dtype=jnp.float32)[:, None]            # (L, 1)
    div_term = jnp.exp(jnp.arange(0, d_model, 2, dtype=jnp.float32)
                       * -(math.log(10000.0) / d_model))                  # (ceil(D/2),)
    ang = position * div_term                                             # (L, ceil(D/2))
    n_sin = (d_model + 1) // 2
    n_cos = d_model // 2
    pe = jnp.zeros((seq_len, d_model), dtype=jnp.float32)
    pe = pe.at[:, 0::2].set(jnp.sin(ang[:, :n_sin]))
    pe = pe.at[:, 1::2].set(jnp.cos(ang[:, :n_cos]))
    return pe                                                             # f32


def _round_up(a, b):
    return (a + b - 1) // b * b


def data_embedding(x, conv_w, conv_b, *, tile_l=None, tile_b=None,
                   out_dtype=None, vmem_budget_bytes=16 * 1024 * 1024):
    """Informer DataEmbedding forward (eval mode).

    x:      (B, L, C_in)
    conv_w: (3, C_in, D)  tap 0 hits x[t-1], tap 1 x[t], tap 2 x[t+1]
            (circular conv, kernel=3, pad=1).
    conv_b: (D,)
    Returns (B, L, D) in out_dtype (default: x.dtype).
    """
    B, L, C = x.shape
    K, Cw, D = conv_w.shape
    assert K == 3 and Cw == C
    out_dtype = out_dtype or x.dtype
    compute_dtype = x.dtype
    in_isz = jnp.dtype(compute_dtype).itemsize
    out_isz = jnp.dtype(out_dtype).itemsize

    # Lane-dense output: pad d_model up to a multiple of 128 (sliced off later).
    Dp = _round_up(D, 128)

    # --- tile selection from a VMEM budget (safe on v5e/v6e/v7x) -------------
    SUB = 16  # multiple of 16 → native sublane packing for both f32 and bf16
    if tile_l is None:
        # per-L-row VMEM bytes for tile_b=1, double-buffered: x_cat + out + pos(f32)
        per_row = 2 * (3 * C * in_isz + Dp * out_isz + Dp * 4)
        tile_l = (vmem_budget_bytes // max(per_row, 1)) // SUB * SUB
        tile_l = min(max(tile_l, SUB), 2048)
    tile_l = max(SUB, _round_up(min(tile_l, _round_up(L, SUB)), SUB))
    L_pad = _round_up(L, tile_l)  # ragged L handled by host padding, not tile_l=L

    if tile_b is None:
        # For short sequences, block over batch too so each grid step moves
        # enough rows to amortize the ~0.35 us/step overhead.
        tile_b = 1
        per_b = 2 * tile_l * (3 * C * in_isz + Dp * out_isz)
        fixed = 2 * (tile_l * Dp * 4 + 3 * C * Dp * in_isz)
        while (tile_b < B and B % (tile_b * 2) == 0
               and tile_b * tile_l < 512
               and (tile_b * 2) * per_b + fixed <= vmem_budget_bytes):
            tile_b *= 2
    assert B % tile_b == 0, "tile_b must divide B"

    # Explicit scoped-VMEM limit covering the double-buffered working set,
    # capped well under v7x's 64 MiB physical VMEM.
    ws = 2 * (tile_b * tile_l * 3 * C * in_isz
              + tile_b * tile_l * Dp * out_isz
              + tile_l * Dp * 4
              + 3 * C * Dp * in_isz)
    vmem_limit = int(min(48 * 1024 * 1024,
                         max(32 * 1024 * 1024, ws * 3 // 2 + (1 << 20))))

    # --- host-side prep -------------------------------------------------------
    # Circular shifts (on the original L, so wrap semantics are exact), then
    # concatenate on channels so the 3 taps fuse into a single matmul.
    x_prev = jnp.roll(x, 1, axis=1)
    x_next = jnp.roll(x, -1, axis=1)
    x_cat = jnp.concatenate([x_prev, x, x_next], axis=-1).astype(compute_dtype)

    # Flatten taps tap-major to match the channel-concat order: rows [w0; w1; w2].
    w_flat = conv_w.reshape(3 * C, D).astype(compute_dtype)

    # Fold conv bias into the positional table (f32; after the grid reorder it
    # is read once per L-tile total, so keeping it f32 costs almost nothing).
    pos_pb = positional_embedding(L, D) + conv_b.astype(jnp.float32)[None, :]

    # Pad L (ragged tail) and D (lane density).
    if L_pad != L:
        x_cat = jnp.pad(x_cat, ((0, 0), (0, L_pad - L), (0, 0)))
        pos_pb = jnp.pad(pos_pb, ((0, L_pad - L), (0, 0)))
    if Dp != D:
        w_flat = jnp.pad(w_flat, ((0, 0), (0, Dp - D)))
        pos_pb = jnp.pad(pos_pb, ((0, 0), (0, Dp - D)))

    # --- pallas call ----------------------------------------------------------
    # Grid: (L-tiles, B-tiles), batch innermost → pos tile stays VMEM-resident
    # across batch steps; weight tile (constant index) is fetched once.
    grid = (L_pad // tile_l, B // tile_b)

    out = pl.pallas_call(
        data_embedding_kernel,
        out_shape=jax.ShapeDtypeStruct((B, L_pad, Dp), out_dtype),
        grid_spec=pltpu.PrefetchScalarGridSpec(
            num_scalar_prefetch=0,
            grid=grid,
            in_specs=[
                pl.BlockSpec((tile_b, tile_l, 3 * C), lambda l, b: (b, l, 0)),
                pl.BlockSpec((3 * C, Dp), lambda l, b: (0, 0)),
                pl.BlockSpec((tile_l, Dp), lambda l, b: (l, 0)),
            ],
            out_specs=pl.BlockSpec((tile_b, tile_l, Dp), lambda l, b: (b, l, 0)),
        ),
        compiler_params=pltpu.CompilerParams(
            dimension_semantics=("parallel", "parallel"),
            vmem_limit_bytes=vmem_limit),
    )(x_cat, w_flat, pos_pb)

    if L_pad != L or Dp != D:
        out = out[:, :L, :D]
    return out


def _make_params(key, c_in, d_model, ksize=3):
    kw, kb = jax.random.split(key)
    fan_in = c_in * ksize
    gain = math.sqrt(2.0 / (1.0 + 0.01 ** 2))
    std = gain / math.sqrt(fan_in)
    # PyTorch Conv1d weight layout (D, C, K), kaiming_normal_(fan_in, leaky_relu).
    w_torch = jax.random.normal(kw, (d_model, c_in, ksize), dtype=jnp.float32) * std
    conv_w = jnp.transpose(w_torch, (2, 1, 0))              # (K, C, D)
    bound = 1.0 / math.sqrt(fan_in)
    conv_b = jax.random.uniform(kb, (d_model,), minval=-bound, maxval=bound,
                                dtype=jnp.float32)
    return conv_w, conv_b


def _reference(x, conv_w, conv_b):
    B, L, C = x.shape
    D = conv_w.shape[-1]
    x_prev = jnp.roll(x, 1, axis=1)
    x_next = jnp.roll(x, -1, axis=1)
    return (jnp.einsum("blc,cd->bld", x_prev, conv_w[0])
            + jnp.einsum("blc,cd->bld", x, conv_w[1])
            + jnp.einsum("blc,cd->bld", x_next, conv_w[2])
            + conv_b[None, None, :]
            + positional_embedding(L, D)[None])


if __name__ == "__main__":
    key = jax.random.PRNGKey(0)
    k0, k1, k2 = jax.random.split(key, 3)

    # --- main config: D_MODEL multiple of 128, L divisible by the tile ------
    B, L, C_IN, D_MODEL = 2, 32, 4, 128
    x = jax.random.normal(k0, (B, L, C_IN), dtype=jnp.float32)
    conv_w, conv_b = _make_params(k1, C_IN, D_MODEL)
    ref = _reference(x, conv_w, conv_b)

    # Explicit small tiles → 2x2 grid (L-tiles outer, batch inner).
    out = data_embedding(x, conv_w, conv_b, tile_l=16, tile_b=1)
    jax.block_until_ready(out)
    assert out.shape == (B, L, D_MODEL)
    assert jnp.allclose(out, ref, atol=1e-5, rtol=1e-5)

    # Auto-tiled defaults (VMEM-budgeted tile_l, batch blocking for short L).
    out_auto = data_embedding(x, conv_w, conv_b)
    jax.block_until_ready(out_auto)
    assert jnp.allclose(out_auto, ref, atol=1e-5, rtol=1e-5)

    # bf16 I/O path: halves HBM read/write traffic; accumulation stays f32
    # in-kernel, pos+bias added on the f32 accumulator.
    out_bf16 = data_embedding(x.astype(jnp.bfloat16), conv_w.astype(jnp.bfloat16),
                              conv_b, tile_l=16, tile_b=1)
    jax.block_until_ready(out_bf16)
    assert out_bf16.dtype == jnp.bfloat16
    assert jnp.allclose(out_bf16.astype(jnp.float32), ref, atol=1e-1, rtol=5e-2)

    # --- ragged config: L not divisible by tile_l, D not a multiple of 128 --
    # Exercises host-side L padding + D padding (lane-dense stores) + slicing.
    B2, L2, C2, D2 = 2, 40, 4, 96
    x2 = jax.random.normal(k2, (B2, L2, C2), dtype=jnp.float32)
    conv_w2, conv_b2 = _make_params(k1, C2, D2)
    ref2 = _reference(x2, conv_w2, conv_b2)
    out2 = data_embedding(x2, conv_w2, conv_b2, tile_l=16, tile_b=1)
    jax.block_until_ready(out2)
    assert out2.shape == (B2, L2, D2)
    assert jnp.allclose(out2, ref2, atol=1e-5, rtol=1e-5)

    print("KERNEL_OK")
</pallas_src>

<mosaic_0001>
module attributes {stable_mosaic.version = 11 : i64} {
  func.func @data_embedding_kernel(%arg0: i32, %arg1: i32, %arg2: memref<1x16x12xf32, #tpu.memory_space<vmem>>, %arg3: memref<12x128xf32, #tpu.memory_space<vmem>>, %arg4: memref<16x128xf32, #tpu.memory_space<vmem>>, %arg5: memref<1x16x128xf32, #tpu.memory_space<vmem>>) attributes {dimension_semantics = [#tpu.dimension_semantics<parallel>, #tpu.dimension_semantics<parallel>], iteration_bounds = array<i64: 2, 2>, scalar_prefetch = 0 : i64, scratch_operands = 0 : i64, tpu.core_type = #tpu.core_type<tc>, window_params = [{transform_indices = @transform_0, window_bounds = array<i64: 1, 16, 12>}, {pipeline_mode = #tpu.pipeline_mode<synchronous>, transform_indices = @transform_1, window_bounds = array<i64: 12, 128>}, {transform_indices = @transform_2, window_bounds = array<i64: 16, 128>}, {transform_indices = @transform_3, window_bounds = array<i64: 1, 16, 128>}]} {
    %c0 = arith.constant 0 : index
    %c0_0 = arith.constant 0 : index
    %c0_1 = arith.constant 0 : index
    %0 = vector.load %arg2[%c0, %c0_0, %c0_1] : memref<1x16x12xf32, #tpu.memory_space<vmem>>, vector<1x16x12xf32>
    %1 = vector.shape_cast %0 : vector<1x16x12xf32> to vector<16x12xf32>
    %c0_2 = arith.constant 0 : index
    %c0_3 = arith.constant 0 : index
    %2 = vector.load %arg3[%c0_2, %c0_3] : memref<12x128xf32, #tpu.memory_space<vmem>>, vector<12x128xf32>
    %cst = arith.constant dense<0.000000e+00> : vector<16x128xf32>
    %3 = tpu.matmul %1, %2, %cst {dimension_numbers = #tpu.dot_dimension_numbers<[1], [0], [0], [1], [0, 0, 1, 1], [], []>} : vector<16x12xf32>, vector<12x128xf32>, vector<16x128xf32> -> vector<16x128xf32>
    %4 = vector.shape_cast %3 : vector<16x128xf32> to vector<1x16x128xf32>
    %c0_4 = arith.constant 0 : index
    %c0_5 = arith.constant 0 : index
    %5 = vector.load %arg4[%c0_4, %c0_5] : memref<16x128xf32, #tpu.memory_space<vmem>>, vector<16x128xf32>
    %6 = vector.shape_cast %5 : vector<16x128xf32> to vector<1x16x128xf32>
    %7 = arith.addf %4, %6 : vector<1x16x128xf32>
    %c0_6 = arith.constant 0 : index
    %c0_7 = arith.constant 0 : index
    %c0_8 = arith.constant 0 : index
    %8 = vector.load %arg5[%c0_6, %c0_7, %c0_8] : memref<1x16x128xf32, #tpu.memory_space<vmem>>, vector<1x16x128xf32>
    tpu.vector_store %arg5[%c0_6, %c0_7, %c0_8], %7 {strides = array<i32>} : memref<1x16x128xf32, #tpu.memory_space<vmem>>, vector<1x16x128xf32>,
    return
  }
  func.func @transform_0(%arg0: i32, %arg1: i32) -> (i32, i32, i32) {
    %c0_i32 = arith.constant 0 : i32
    %c0_i32_0 = arith.constant 0 : i32
    return %arg1, %arg0, %c0_i32 : i32, i32, i32
  }
  func.func @transform_1(%arg0: i32, %arg1: i32) -> (i32, i32) {
    %c0_i32 = arith.constant 0 : i32
    %c0_i32_0 = arith.constant 0 : i32
    %c0_i32_1 = arith.constant 0 : i32
    return %c0_i32, %c0_i32_0 : i32, i32
  }
  func.func @transform_2(%arg0: i32, %arg1: i32) -> (i32, i32) {
    %c0_i32 = arith.constant 0 : i32
    %c0_i32_0 = arith.constant 0 : i32
    return %arg0, %c0_i32 : i32, i32
  }
  func.func @transform_3(%arg0: i32, %arg1: i32) -> (i32, i32, i32) {
    %c0_i32 = arith.constant 0 : i32
    %c0_i32_0 = arith.constant 0 : i32
    return %arg1, %arg0, %c0_i32 : i32, i32, i32
  }
}

</mosaic_0001>

<llo_original>
// kernel: tpu_custom_call.1
$region0: #{tpu_custom_call.1}
  #allocation0 [shape = 'u32[]', space=smem, size = 0x4, offset = 0x4, fixed_abs, tag = 'smem constant byte address 0x4 - core index']
  #allocation1 [shape = 'u32[144,128]{1,0:T(1,128)}', space=vmem, size = 0x12000, scoped, tag = 'internal scratch']
  %s0 = inlined_call_operand.vmem [shape: f32[2,32,12], index: 0, kind: input, shape index: {}]
  %s1 = inlined_call_operand.vmem [shape: f32[12,128], index: 1, kind: input, shape index: {}]
  %s2 = inlined_call_operand.vmem [shape: f32[32,128], index: 2, kind: input, shape index: {}]
  %s3 = inlined_call_operand.hbm [shape: f32[2,32,128], index: 3, kind: output, shape index: {}]
  %s4 = sld [smem:[#allocation0]]
  $region45: #{tpu_custom_call.1} parent=0
    _
  %s6 = ssub.s32 1, %s4
  %s7 = scalar_select 0, %s6, %s4
  $region1: #{tpu_custom_call.1} parent=0
    #allocation2 [shape = 'u8[16384]{0}', space=vmem, size = 0x4000, scoped, tag = 'output window, operand 0']
    #allocation3 [shape = 's32[2]{0}', space=sflag, size = 0x8, scoped, tag = 'scoped memory for tpu_custom_call.1']
    %8 = vsyncpa [#allocation3], 0
    %s9 = scalar_lea.sflag [#allocation3], 1
    %10 = vsyncpa %s9, 0
    loop: start=0, step=1, limit=6
    $region2: #{tpu_custom_call.1} parent=1 // loop_pre_header
      _
    $region3: #{tpu_custom_call.1} parent=1 // loop_header
      %s12 = sphi 0, %s16
      %p13 = scmp.ge.s32.totalorder %s12, 6
      %s19 = sphi 0, %s31
      %s20 = sphi 0, %s27
      %s21 = sphi 0, %s19
      %s22 = sphi 0, %s20
      %s23 = sphi 0, %s21
      %s24 = sphi 0, %s22
      %s36 = sphi 0, %s38
      %s39 = sphi 0, %s36
      %s40 = sphi 0, %s39
      %s56 = sphi 0, %s40
      %s60 = sphi 0, %s60
      %s62 = sphi 0, %s60
      %s63 = sphi 0, %s62
      %s77 = sphi 0, %s63
      %s83 = sphi 0, %s85
      %s86 = sphi 0, %s83
      %s87 = sphi 0, %s86
      %s103 = sphi 0, %s87
      %s111 = sphi 0, %s113
      %s114 = sphi 0, %s111
      %s115 = sphi 0, %s114
      %s131 = sphi 0, %s115
    $region4: #{tpu_custom_call.1} parent=1 // loop_header_branch
      %15 = sbr.rel (%p13) target = $region8
    $region5: #{tpu_custom_call.1} parent=1 // loop_body
      %s17 = ssub.s32 %s12, 1
      %s18 = ssub.s32 %s12, 2
      %s25 = sadd.s32 1, %s20
      %p26 = scmp.ge.s32.totalorder %s25, 2
      %s27 = scalar_select %p26, 0, %s25
      %s28 = sadd.s32 1, %s19
      %s29 = scalar_select %p26, %s28, %s19
      %p30 = scmp.ge.s32.totalorder %s29, 2
      %s31 = scalar_select %p30, 0, %s29
      %s32 = ssub.s32 %s20, %s27
      %s33 = ssub.s32 %s19, %s31
      %s34 = sor.u32 %s32, %s33
      %p35 = scmp.eq.s32.totalorder %s34, 0
      %s37 = sadd.s32 %s36, 1
      %s38 = scalar_select %p35, %s36, %s37
      %p41 = pneg %p35
      %p42 = scmp.eq.s32.totalorder %s12, 3
      %p43 = por %p41, %p42
      %p44 = scmp.ne.s32.totalorder %s36, %s39
      %p45 = scmp.eq.s32.totalorder %s12, 0
      %p46 = por %p44, %p45
      %p47 = scmp.ne.s32.totalorder %s36, %s39
      %p48 = scmp.eq.s32.totalorder %s17, 3
      %p49 = por %p47, %p48
      %p50 = scmp.ne.s32.totalorder %s39, %s40
      %p51 = scmp.eq.s32.totalorder %s17, 0
      %p52 = por %p50, %p51
      %p53 = scmp.ne.s32.totalorder %s39, %s40
      %p54 = scmp.eq.s32.totalorder %s18, 3
      %p55 = por %p53, %p54
      %p57 = scmp.ne.s32.totalorder %s40, %s56
      %p58 = scmp.eq.s32.totalorder %s18, 0
      %p59 = por %p57, %p58
      %s61 = sadd.s32 %s60, 1
      %p64 = scmp.eq.s32.totalorder %s12, 3
      %p65 = scmp.ne.s32.totalorder %s60, %s62
      %p66 = scmp.eq.s32.totalorder %s12, 0
      %p67 = por %p65, %p66
      %p68 = scmp.ne.s32.totalorder %s60, %s62
      %p69 = scmp.eq.s32.totalorder %s17, 3
      %p70 = por %p68, %p69
      %p71 = scmp.ne.s32.totalorder %s62, %s63
      %p72 = scmp.eq.s32.totalorder %s17, 0
      %p73 = por %p71, %p72
      %p74 = scmp.ne.s32.totalorder %s62, %s63
      %p75 = scmp.eq.s32.totalorder %s18, 3
      %p76 = por %p74, %p75
      %p78 = scmp.ne.s32.totalorder %s63, %s77
      %p79 = scmp.eq.s32.totalorder %s18, 0
      %p80 = por %p78, %p79
      %s81 = ssub.s32 %s19, %s31
      %p82 = scmp.eq.s32.totalorder %s81, 0
      %s84 = sadd.s32 %s83, 1
      %s85 = scalar_select %p82, %s83, %s84
      %p88 = pneg %p82
      %p89 = scmp.eq.s32.totalorder %s12, 3
      %p90 = por %p88, %p89
      %p91 = scmp.ne.s32.totalorder %s83, %s86
      %p92 = scmp.eq.s32.totalorder %s12, 0
      %p93 = por %p91, %p92
      %p94 = scmp.ne.s32.totalorder %s83, %s86
      %p95 = scmp.eq.s32.totalorder %s17, 3
      %p96 = por %p94, %p95
      %p97 = scmp.ne.s32.totalorder %s86, %s87
      %p98 = scmp.eq.s32.totalorder %s17, 0
      %p99 = por %p97, %p98
      %p100 = scmp.ne.s32.totalorder %s86, %s87
      %p101 = scmp.eq.s32.totalorder %s18, 3
      %p102 = por %p100, %p101
      %p104 = scmp.ne.s32.totalorder %s87, %s103
      %p105 = scmp.eq.s32.totalorder %s18, 0
      %p106 = por %p104, %p105
      %s107 = ssub.s32 %s20, %s27
      %s108 = ssub.s32 %s19, %s31
      %s109 = sor.u32 %s107, %s108
      %p110 = scmp.eq.s32.totalorder %s109, 0
      %s112 = sadd.s32 %s111, 1
      %s113 = scalar_select %p110, %s111, %s112
      %p116 = pneg %p110
      %p117 = scmp.eq.s32.totalorder %s12, 3
      %p118 = por %p116, %p117
      %p119 = scmp.ne.s32.totalorder %s111, %s114
      %p120 = scmp.eq.s32.totalorder %s12, 0
      %p121 = por %p119, %p120
      %p122 = scmp.ne.s32.totalorder %s111, %s114
      %p123 = scmp.eq.s32.totalorder %s17, 3
      %p124 = por %p122, %p123
      %p125 = scmp.ne.s32.totalorder %s114, %s115
      %p126 = scmp.eq.s32.totalorder %s17, 0
      %p127 = por %p125, %p126
      %p128 = scmp.ne.s32.totalorder %s114, %s115
      %p129 = scmp.eq.s32.totalorder %s18, 3
      %p130 = por %p128, %p129
      %p132 = scmp.ne.s32.totalorder %s115, %s131
      %p133 = scmp.eq.s32.totalorder %s18, 0
      %p134 = por %p132, %p133
      %p135 = scmp.le.s32.totalorder 1, %s12
      %p136 = scmp.lt.s32.totalorder %s12, 5
      %p137 = pnand %p135, %p136
      %p138 = pneg %p137
      // Predicated region
      $region9: #{tpu_custom_call.1} parent=5 // pred_check
        _
      $region10: #{tpu_custom_call.1} parent=5 // pred_check_branch
        %140 = sbr.rel (%p137) target = $region12
      $region11: #{tpu_custom_call.1} parent=5 // pred_region
        %s141 = ssub.s32 %s12, 1
        // Predicated region
        $region13: #{tpu_custom_call.1} parent=11 // pred_check
          %p142 = pneg %p73
        $region14: #{tpu_custom_call.1} parent=11 // pred_check_branch
          %144 = sbr.rel (%p142) target = $region16
        $region15: #{tpu_custom_call.1} parent=11 // pred_region
          _
        $region16: #{tpu_custom_call.1} parent=11 // pred_fallthru
          _
      $region12: #{tpu_custom_call.1} parent=5 // pred_fallthru
        _
      %p145 = scmp.lt.s32.totalorder %s12, 4
      // Predicated region
      $region17: #{tpu_custom_call.1} parent=5 // pred_check
        %p146 = pneg %p145
      $region18: #{tpu_custom_call.1} parent=5 // pred_check_branch
        %148 = sbr.rel (%p146) target = $region20
      $region19: #{tpu_custom_call.1} parent=5 // pred_region
        // Predicated region
        $region21: #{tpu_custom_call.1} parent=19 // pred_check
          %p149 = pneg %p46
        $region22: #{tpu_custom_call.1} parent=19 // pred_check_branch
          %151 = sbr.rel (%p149) target = $region24
        $region23: #{tpu_custom_call.1} parent=19 // pred_region
          %s152 = smul.u32 2, %s19
          %p153 = scmp.lt.s32.totalorder %s20, 1
          %s154 = scalar_select %p153, %s20, 1
          %p155 = scmp.lt.s32.totalorder %s152, 3
          %s156 = scalar_select %p155, %s152, 3
          %s157 = smul.addr %s154, 4
          %s158 = sadd.s32 %s156, %s157
          %s159 = smul.addr %s158, 8
          %s160 = scalar_lea.vmem %s0, %s159
          %s161 = smul.u32 2, %s19
        $region24: #{tpu_custom_call.1} parent=19 // pred_fallthru
          _
        // Predicated region
        $region25: #{tpu_custom_call.1} parent=19 // pred_check
          %p162 = pneg %p93
        $region26: #{tpu_custom_call.1} parent=19 // pred_check_branch
          %164 = sbr.rel (%p162) target = $region28
        $region27: #{tpu_custom_call.1} parent=19 // pred_region
          %s165 = smul.u32 2, %s19
          %p166 = scmp.lt.s32.totalorder %s165, 3
          %s167 = scalar_select %p166, %s165, 3
          %s168 = smul.addr %s167, 8
          %s169 = scalar_lea.vmem %s2, %s168
          %s170 = smul.u32 2, %s19
        $region28: #{tpu_custom_call.1} parent=19 // pred_fallthru
          _
      $region20: #{tpu_custom_call.1} parent=5 // pred_fallthru
        _
      %p171 = scmp.le.s32.totalorder 1, %s12
      %p172 = scmp.lt.s32.totalorder %s12, 5
      %p173 = pnand %p171, %p172
      %p174 = pneg %p173
      // Predicated region
      $region29: #{tpu_custom_call.1} parent=5 // pred_check
        _
      $region30: #{tpu_custom_call.1} parent=5 // pred_check_branch
        %176 = sbr.rel (%p173) target = $region32
      $region31: #{tpu_custom_call.1} parent=5 // pred_region
        %s177 = ssub.s32 %s12, 1
        %s178 = smul.u32 2, %s21
        %p179 = scmp.lt.s32.totalorder %s22, 1
        %s180 = scalar_select %p179, %s22, 1
        %p181 = scmp.lt.s32.totalorder %s178, 3
        %s182 = scalar_select %p181, %s178, 3
        %s183 = smul.addr %s180, 4
        %s184 = sadd.s32 %s182, %s183
        %s185 = smul.addr %s184, 8
        %s186 = scalar_lea.vmem %s0, %s185
        %p187 = pneg %p52
        %p188 = pneg %p49
        %p189 = pneg %p73
        %p190 = pneg %p70
        %s191 = smul.u32 2, %s21
        %p192 = scmp.lt.s32.totalorder %s191, 3
        %s193 = scalar_select %p192, %s191, 3
        %s194 = smul.addr %s193, 8
        %s195 = scalar_lea.vmem %s2, %s194
        %p196 = pneg %p99
        %p197 = pneg %p96
        %p198 = pneg %p127
        %p199 = pneg %p124
        %s200 = sand.u32 %s114, 1
        %s201 = scalar_lea.sflag [#allocation3], %s200
        %s202 = sand.u32 %s114, 1
        %s203 = smul.addr %s202, 16
        %s204 = scalar_lea.vmem [#allocation2], %s203
        %s205 = smul.u32 2, %s21
        %p206 = scmp.lt.s32.totalorder %s22, 1
        %s207 = scalar_select %p206, %s22, 1
        %p208 = scmp.lt.s32.totalorder %s205, 3
        %s209 = scalar_select %p208, %s205, 3
        %s210 = smul.addr %s207, 4
        %s211 = sadd.s32 %s209, %s210
        %s212 = smul.addr %s211, 8
        %s213 = scalar_lea.vmem %s0, %s212
        %s214 = smul.u32 2, %s21
        %s215 = smul.u32 2, %s21
        %p216 = scmp.lt.s32.totalorder %s215, 3
        %s217 = scalar_select %p216, %s215, 3
        %s218 = smul.addr %s217, 8
        %s219 = scalar_lea.vmem %s2, %s218
        %s220 = smul.u32 2, %s21
        %s221 = smul.u32 2, %s21
        %v222 = vld [vmem:[%s213] sm:$0xff]
        %v223 = vld [vmem:[%s213 + $0x8] sm:$0xff]
        %v224 = vld [vmem:[%s1] sm:$0xff]
        %v225 = vld [vmem:[%s1 + $0x8] sm:$0xf]
        %vm226 = vcmask 97280
        %v228 = vsel %vm226, %v222, 0
        %v231 = vsel %vm226, %v223, 0
        %vm233 = vcmask 1043456
        %v235 = vsel %vm233, %v225, 0
        %237 = vmatprep.subr.mxu0 0.0
        %238 = vmatpush1.msra.mxu0 %v224
        %239 = vmatprep.subr.mxu0 0.0
        %240 = vmatpush1.msra.mxu0 %v235
        %241 = vmatprep.subr.mxu0 0.0
        %242 = vmatpush1.msra.mxu0 0.0
        %243 = vmatprep.subr.mxu0 0.0
        %244 = vmatpush1.msra.mxu0 0.0
        %245 = vmatprep.subr.mxu0 0.0
        %246 = vmatpush1.msra.mxu0 0.0
        %247 = vmatprep.subr.mxu0 0.0
        %248 = vmatpush1.msra.mxu0 0.0
        %249 = vmatprep.subr.mxu0 0.0
        %250 = vmatpush1.msra.mxu0 0.0
        %251 = vmatprep.subr.mxu0 0.0
        %252 = vmatpush1.msra.mxu0 0.0
        %253 = vmatprep.subr.mxu0 0.0
        %254 = vmatpush1.msra.mxu0 0.0
        %255 = vmatprep.subr.mxu0 0.0
        %256 = vmatpush1.msra.mxu0 0.0
        %257 = vmatprep.subr.mxu0 0.0
        %258 = vmatpush1.msra.mxu0 0.0
        %259 = vmatprep.subr.mxu0 0.0
        %260 = vmatpush1.msra.mxu0 0.0
        %261 = vmatprep.subr.mxu0 0.0
        %262 = vmatpush1.msra.mxu0 0.0
        %263 = vmatprep.subr.mxu0 0.0
        %264 = vmatpush1.msra.mxu0 0.0
        %265 = vmatprep.subr.mxu0 0.0
        %266 = vmatpush1.msra.mxu0 0.0
        %267 = vmatprep.subr.mxu0 0.0
        %268 = vmatpush1.msra.mxu0 0.0
        %269 = vmatprep.subr.mxu0 0.0
        %270 = vmatpush1.msra.mxu0 0.0
        %271 = vmatprep.subr.mxu0 0.0
        %272 = vmatpush1.msra.mxu0 0.0
        %273 = vmatprep.subr.mxu0 0.0
        %274 = vmatpush1.msra.mxu0 0.0
        %275 = vmatprep.subr.mxu0 0.0
        %276 = vmatpush1.msra.mxu0 0.0
        %277 = vmatprep.subr.mxu0 0.0
        %278 = vmatpush1.msra.mxu0 0.0
        %279 = vmatprep.subr.mxu0 0.0
        %280 = vmatpush1.msra.mxu0 0.0
        %281 = vmatprep.subr.mxu0 0.0
        %282 = vmatpush1.msra.mxu0 0.0
        %283 = vmatprep.subr.mxu0 0.0
        %284 = vmatpush1.msra.mxu0 0.0
        %285 = vmatprep.subr.mxu0 0.0
        %286 = vmatpush1.msra.mxu0 0.0
        %287 = vmatprep.subr.mxu0 0.0
        %288 = vmatpush1.msra.mxu0 0.0
        %289 = vmatprep.subr.mxu0 0.0
        %290 = vmatpush1.msra.mxu0 0.0
        %291 = vmatprep.subr.mxu0 0.0
        %292 = vmatpush1.msra.mxu0 0.0
        %293 = vmatprep.subr.mxu0 0.0
        %294 = vmatpush1.msra.mxu0 0.0
        %295 = vmatprep.subr.mxu0 0.0
        %296 = vmatpush1.msra.mxu0 0.0
        %297 = vmatprep.subr.mxu0 0.0
        %298 = vmatpush1.msra.mxu0 0.0
        %299 = vmatprep.subr.mxu0 0.0
        %300 = vmatpush1.msra.mxu0 0.0
        %301 = vmatprep.mubr.f32.mxu0 0.0
        %302 = vmatmul.mubr.f32.gmra.mrb[0].mxu0 %v228
        %v303 = vpop.f32.mrb[0].mxu0
        %v304 = vadd.f32 0.0, %v303
        %v305 = vpop.f32.mrb[0].mxu0
        %306 = vmatprep.mubr.f32.mxu0 0.0
        %307 = vmatmul.mubr.f32.gmra.mrb[0].mxu0 %v231
        %v308 = vpop.f32.mrb[0].mxu0
        %v309 = vadd.f32 0.0, %v308
        %v310 = vpop.f32.mrb[0].mxu0
        %311 = vdwg.mxu0
        %v312 = vld [vmem:[%s219] sm:$0xff]
        %v313 = vld [vmem:[%s219 + $0x8] sm:$0xff]
        %v314 = vadd.f32 %v304, %v312
        %v315 = vadd.f32 %v309, %v313
        %316 = vst [vmem:[%s204] sm:$0xff] %v314
        %317 = vst [vmem:[%s204 + $0x8] sm:$0xff] %v315
        %s318 = sand.u32 %s114, 1
        %s319 = scalar_lea.sflag [#allocation3], %s318
        %s320 = sand.u32 %s114, 1
        %s321 = smul.addr %s320, 16
        %s322 = scalar_lea.vmem [#allocation2], %s321
        // Predicated region
        $region33: #{tpu_custom_call.1} parent=31 // pred_check
          %p323 = pneg %p124
        $region34: #{tpu_custom_call.1} parent=31 // pred_check_branch
          %325 = sbr.rel (%p323) target = $region36
        $region35: #{tpu_custom_call.1} parent=31 // pred_region
          %s326 = smul.u32 2, %s21
          %s328 = ssub.s32 256, 256
          %329 = vsyncadd %s319, %s328
          %s330 = smul.addr %s22, 4
          %s331 = sadd.s32 %s326, %s330
          %s332 = smul.addr %s331, 128
          %s333 = scalar_lea.hbm %s3, %s332
          %s334 = sshll.u32 %s322, 4
          %s335 = int_to_ptr.vmem [resolvable:$true] %s334
          %340 = dma.vmem_to_hbm [thread:$0]  %s335, 256, %s333, %s319, 128, 128, 8
        $region36: #{tpu_custom_call.1} parent=31 // pred_fallthru
          _
      $region32: #{tpu_custom_call.1} parent=5 // pred_fallthru
        _
      %p341 = scmp.le.s32.totalorder 2, %s12
      // Predicated region
      $region37: #{tpu_custom_call.1} parent=5 // pred_check
        %p342 = pneg %p341
      $region38: #{tpu_custom_call.1} parent=5 // pred_check_branch
        %344 = sbr.rel (%p342) target = $region40
      $region39: #{tpu_custom_call.1} parent=5 // pred_region
        %s345 = ssub.s32 %s12, 2
        // Predicated region
        $region41: #{tpu_custom_call.1} parent=39 // pred_check
          %p346 = pneg %p130
        $region42: #{tpu_custom_call.1} parent=39 // pred_check_branch
          %348 = sbr.rel (%p346) target = $region44
        $region43: #{tpu_custom_call.1} parent=39 // pred_region
          %s349 = sand.u32 %s115, 1
          %s350 = scalar_lea.sflag [#allocation3], %s349
          %s351 = sand.u32 %s115, 1
          %s352 = smul.addr %s351, 16
          %s353 = scalar_lea.vmem [#allocation2], %s352
          %354 = dma.done %s350, 256
        $region44: #{tpu_custom_call.1} parent=39 // pred_fallthru
          _
      $region40: #{tpu_custom_call.1} parent=5 // pred_fallthru
        _
    $region6: #{tpu_custom_call.1} parent=1 // loop_footer
      %s16 = sadd.s32 1, %s12
    $region7: #{tpu_custom_call.1} parent=1 // loop_footer_branch
      %11 = sbr.rel target = $region3
    $region8: #{tpu_custom_call.1} parent=1 // loop_exit
      _
    %355 = vsyncpa [#allocation3], 1
    %s356 = scalar_lea.sflag [#allocation3], 1
    %357 = vsyncpa %s356, 1

</llo_original>
